<compile_context>
chip_gen: v6e
topology: v6e:2x2x1
jax: 0.10.0
libtpu: 0.0.40
codegen_flags: <defaults>
</compile_context>

<pallas_src>
import functools

import jax
import jax.numpy as jnp
from jax.experimental import pallas as pl
from jax.experimental.pallas import tpu as pltpu


# ----------------------------- kernel body ---------------------------------


def _mixup_kernel(lam_ref, x_ref, out_ref):
    """lam_ref: SMEM (1,) f32, x_ref/out_ref: VMEM (B, TILE_D) image tiles."""
    lam = lam_ref[0]                                  # f32 scalar
    x = x_ref[...].astype(jnp.float32)                # blend in f32 (v5e has no bf16 VALU)
    B = x.shape[0]
    if B > 1:
        if B % 8 == 0:
            # Sublane-aligned: roll-by-1 maps to the XLU rotate slot (free vs VALU/ld/st).
            x_roll = pltpu.roll(x, shift=1, axis=0)
        else:
            # Small / unaligned B: static-slice concat (still a whole-tile op,
            # hidden under DMA for this bandwidth-bound kernel).
            x_roll = jnp.concatenate([x[B - 1:, :], x[:B - 1, :]], axis=0)
    else:
        x_roll = x

    out_ref[...] = (lam * x + (1.0 - lam) * x_roll).astype(out_ref.dtype)


# --------------------------- tiling / budgets -------------------------------


def _cdiv(a, b):
    return -(-a // b)


def _round_up(a, m):
    return _cdiv(a, m) * m


def _vmem_budget_bytes():
    """Generation-aware VMEM budget for the pipelined blocks + temporaries."""
    cap = 64 * 1024 * 1024  # conservative default (v7x physical VMEM)
    try:
        info_fn = getattr(pltpu, "get_tpu_info", None)
        if info_fn is not None:
            cap = int(getattr(info_fn(), "vmem_capacity_bytes", cap))
    except Exception:
        pass
    # ~62% of physical, capped at 80 MiB: ~40 MiB on v7x (64 MiB VMEM),
    # ~80 MiB on v5e/v6e (128 MiB VMEM).
    return max(min(int(cap * 0.625), 80 * 1024 * 1024), 16 * 1024 * 1024)


def _pick_tile_d(B, D, itemsize, tile_budget):
    """Lane-aligned TILE_D from a VMEM byte budget (B- and dtype-aware)."""
    d_pad = _round_up(D, 128)
    # Live VMEM per 128-lane column of the tile:
    #   2 in + 2 out double-buffered pipeline blocks (input dtype)
    #   + ~3 block-sized f32 temporaries (upcast copy, rolled copy, blend).
    per_col = 4 * B * itemsize + 3 * B * 4
    tile = (tile_budget // per_col) // 128 * 128
    # Stay at >= 512 lanes when affordable (per-step ~0.35us overhead tax);
    # 128 lanes is the hard floor.
    if 512 * per_col <= tile_budget:
        tile = max(tile, 512)
    tile = max(tile, 128)
    # Prefer >= 4 grid steps so the "parallel" D axis can shard across v7x's
    # two TensorCores, but only if each step still moves >= ~2 MiB per block.
    quarter = _round_up(_cdiv(d_pad, 4), 128)
    if quarter >= 512 and quarter * B * itemsize >= 2 * 1024 * 1024:
        tile = min(tile, quarter)
    if tile >= D:
        return D  # single full-width block (full-dim blocks are always legal)
    return tile   # multiple of 128; partial last block is masked by Pallas


def _mixup_images(x2, lam, *, inplace=False):
    """x2: (B, D) flattened images, lam: () f32 scalar -> mixed (B, D)."""
    B, D = x2.shape
    itemsize = jnp.dtype(x2.dtype).itemsize
    budget = _vmem_budget_bytes()
    tile_d = _pick_tile_d(B, D, itemsize, (budget * 9) // 10)  # ~10% headroom
    grid = (_cdiv(D, tile_d),)

    extra = {}
    if inplace:
        # Image output reuses the image input HBM buffer (footprint win; only a
        # true in-place update if the caller donates `batch`).
        extra["input_output_aliases"] = {1: 0}

    return pl.pallas_call(
        _mixup_kernel,
        out_shape=jax.ShapeDtypeStruct((B, D), x2.dtype),
        grid=grid,
        in_specs=[
            pl.BlockSpec(memory_space=pltpu.MemorySpace.SMEM),   # lam (1,) f32
            pl.BlockSpec((B, tile_d), lambda d: (0, d)),         # image tile
        ],
        out_specs=pl.BlockSpec((B, tile_d), lambda d: (0, d)),
        compiler_params=pltpu.CompilerParams(
            dimension_semantics=("parallel",),   # D-tiles independent -> megacore
            vmem_limit_bytes=budget,
        ),
        cost_estimate=pl.CostEstimate(
            flops=3 * B * D,
            transcendentals=0,
            bytes_accessed=2 * B * D * itemsize,
        ),
        **extra,
    )(lam.reshape(1).astype(jnp.float32), x2)


# ------------------------------- wrapper ------------------------------------


@functools.partial(jax.jit, static_argnames=("num_classes", "p", "alpha", "inplace"))
def random_mixup(key, batch, target, *, num_classes, p=0.5, alpha=1.0, inplace=False):
    """batch: (B, C, H, W) float, target: (B,) int -> (mixed_batch, mixed_onehot, lam)."""
    B, C, H, W = batch.shape
    D = C * H * W

    # --- randomness (host/JAX glue, mirrors torch.rand + _sample_dirichlet) ---
    k_apply, k_lam = jax.random.split(key)
    u = jax.random.uniform(k_apply, (), dtype=jnp.float32)
    lam_beta = jax.random.beta(k_lam, alpha, alpha, dtype=jnp.float32)  # Beta(a,a)
    apply_mix = u < p
    lam_eff = jnp.where(apply_mix, lam_beta, jnp.float32(1.0))

    # One-hot targets are tiny -> plain JAX, keeps the Pallas kernel image-only.
    onehot = jax.nn.one_hot(target, num_classes, dtype=batch.dtype)

    def _mix(args):
        x, oh, lam = args
        mixed_x = _mixup_images(x.reshape(B, D), lam, inplace=inplace)
        mixed_x = mixed_x.reshape(B, C, H, W)
        lam_t = lam.astype(jnp.float32)
        mixed_t = (lam_t * oh.astype(jnp.float32)
                   + (1.0 - lam_t) * jnp.roll(oh.astype(jnp.float32), 1, axis=0))
        return mixed_x, mixed_t.astype(oh.dtype)

    def _skip(args):
        x, oh, _ = args
        return x, oh   # pass-through: no HBM round-trip through the kernel

    out_x, out_t = jax.lax.cond(apply_mix, _mix, _skip, (batch, onehot, lam_beta))
    return out_x, out_t, lam_eff


# ------------------------------ self-test -----------------------------------


def _reference(batch, target, num_classes, lam):
    onehot = jax.nn.one_hot(target, num_classes, dtype=batch.dtype)
    b_roll = jnp.roll(batch, 1, axis=0)
    t_roll = jnp.roll(onehot, 1, axis=0)
    return lam * batch + (1.0 - lam) * b_roll, lam * onehot + (1.0 - lam) * t_roll


def _run_case(key, B, C, H, W, num_classes, p, inplace=False):
    k_img, k_tgt, k_mix = jax.random.split(key, 3)
    batch = jax.random.normal(k_img, (B, C, H, W), dtype=jnp.float32)
    target = jax.random.randint(k_tgt, (B,), 0, num_classes, dtype=jnp.int32)

    mixed_x, mixed_t, lam = random_mixup(
        k_mix, batch, target, num_classes=num_classes, p=p, alpha=1.0, inplace=inplace
    )
    mixed_x = jax.block_until_ready(mixed_x)
    mixed_t = jax.block_until_ready(mixed_t)
    lam = float(jax.block_until_ready(lam))

    ref_x, ref_t = _reference(batch, target, num_classes, lam)
    assert mixed_x.shape == (B, C, H, W) and mixed_t.shape == (B, num_classes)
    assert jnp.allclose(mixed_x, ref_x, atol=1e-5, rtol=1e-5)
    assert jnp.allclose(mixed_t, ref_t, atol=1e-5, rtol=1e-5)


if __name__ == "__main__":
    key = jax.random.PRNGKey(0)
    k1, k2, k3, k4 = jax.random.split(key, 4)

    # Small shape from the module spec (B=2, C=4, 16x16), mix forced on.
    _run_case(k1, B=2, C=4, H=16, W=16, num_classes=10, p=1.0)
    # Sublane-aligned batch (exercises pltpu.roll path) on a CIFAR-like shape.
    _run_case(k2, B=8, C=3, H=32, W=32, num_classes=10, p=1.0)
    # Skip path (coin flip says no mixup): identity on batch, one-hot target.
    _run_case(k3, B=2, C=4, H=16, W=16, num_classes=10, p=0.0)
    # inplace=True path: image output aliases the image input buffer.
    _run_case(k4, B=8, C=4, H=16, W=16, num_classes=10, p=1.0, inplace=True)

    print("KERNEL_OK")
</pallas_src>

<mosaic_0001>
module attributes {stable_mosaic.version = 11 : i64} {
  func.func @_mixup_kernel(%arg0: i32, %arg1: memref<1xf32, #tpu.memory_space<smem>>, %arg2: memref<2x1024xf32, #tpu.memory_space<vmem>>, %arg3: memref<2x1024xf32, #tpu.memory_space<vmem>>) attributes {dimension_semantics = [#tpu.dimension_semantics<parallel>], iteration_bounds = array<i64: 1>, scalar_prefetch = 0 : i64, scratch_operands = 0 : i64, tpu.core_type = #tpu.core_type<tc>, window_params = [{transform_indices = @transform_0, window_bounds = array<i64: 1>}, {transform_indices = @transform_1, window_bounds = array<i64: 2, 1024>}, {transform_indices = @transform_2, window_bounds = array<i64: 2, 1024>}]} {
    %c0 = arith.constant 0 : index
    %0 = memref.load %arg1[%c0] : memref<1xf32, #tpu.memory_space<smem>>
    %c0_0 = arith.constant 0 : index
    %c0_1 = arith.constant 0 : index
    %1 = vector.load %arg2[%c0_0, %c0_1] : memref<2x1024xf32, #tpu.memory_space<vmem>>, vector<2x1024xf32>
    %2 = vector.extract_strided_slice %1 {offsets = [1, 0], sizes = [1, 1024], strides = [1, 1]} : vector<2x1024xf32> to vector<1x1024xf32>
    %3 = vector.extract_strided_slice %1 {offsets = [0, 0], sizes = [1, 1024], strides = [1, 1]} : vector<2x1024xf32> to vector<1x1024xf32>
    %4 = tpu.concatenate %2, %3 in 0 : vector<1x1024xf32>, vector<1x1024xf32> -> vector<2x1024xf32>
    %5 = vector.broadcast %0 : f32 to vector<2x1024xf32>
    %6 = arith.mulf %5, %1 : vector<2x1024xf32>
    %cst = arith.constant 1.000000e+00 : f32
    %7 = arith.subf %cst, %0 : f32
    %8 = vector.broadcast %7 : f32 to vector<2x1024xf32>
    %9 = arith.mulf %8, %4 : vector<2x1024xf32>
    %10 = arith.addf %6, %9 : vector<2x1024xf32>
    %c0_2 = arith.constant 0 : index
    %c0_3 = arith.constant 0 : index
    %11 = vector.load %arg3[%c0_2, %c0_3] : memref<2x1024xf32, #tpu.memory_space<vmem>>, vector<2x1024xf32>
    tpu.vector_store %arg3[%c0_2, %c0_3], %10 {strides = array<i32>} : memref<2x1024xf32, #tpu.memory_space<vmem>>, vector<2x1024xf32>,
    return
  }
  func.func @transform_0(%arg0: i32) -> i32 {
    %c0_i32 = arith.constant 0 : i32
    %c0_i32_0 = arith.constant 0 : i32
    return %c0_i32 : i32
  }
  func.func @transform_1(%arg0: i32) -> (i32, i32) {
    %c0_i32 = arith.constant 0 : i32
    %c0_i32_0 = arith.constant 0 : i32
    return %c0_i32, %arg0 : i32, i32
  }
  func.func @transform_2(%arg0: i32) -> (i32, i32) {
    %c0_i32 = arith.constant 0 : i32
    %c0_i32_0 = arith.constant 0 : i32
    return %c0_i32, %arg0 : i32, i32
  }
}

</mosaic_0001>

<llo_original>
// kernel: branch_1_fun.1
$region0: #{branch_1_fun.1}
  #allocation0 [shape = 'u32[]', space=smem, size = 0x4, offset = 0x4, fixed_abs, tag = 'smem constant byte address 0x4 - core index']
  #allocation1 [shape = 'u32[144,128]{1,0:T(1,128)}', space=vmem, size = 0x12000, scoped, tag = 'internal scratch']
  #allocation2 [shape = 'f32[1]{0:T(128)S(6)}', space=smem, size = 0x200, scoped, tag = 'scoped memory for branch_1_fun.1']
  %s0 = inlined_call_operand.<no memory space> [shape: f32[1], index: 0, kind: input, shape index: {}]
  %s1 = inlined_call_operand.vmem [shape: f32[2,1024], index: 1, kind: input, shape index: {}]
  %s2 = inlined_call_operand.vmem [shape: f32[2,1024], index: 2, kind: output, shape index: {}]
  %s3 = sld [smem:[#allocation0]]
  $region18: #{branch_1_fun.1} parent=0
    _
  %s5 = ssub.s32 1, %s3
  %s6 = scalar_select 0, %s5, %s3
  %7 = sst [smem:[#allocation2]] %s0
  // Predicated region
  $region2: #{branch_1_fun.1} parent=0 // pred_check
    _
  $region3: #{branch_1_fun.1} parent=0 // pred_check_branch
    %9 = sbr.rel (0) target = $region5
  $region4: #{branch_1_fun.1} parent=0 // pred_region
    _
  $region5: #{branch_1_fun.1} parent=0 // pred_fallthru
    _
  // Predicated region
  $region6: #{branch_1_fun.1} parent=0 // pred_check
    _
  $region7: #{branch_1_fun.1} parent=0 // pred_check_branch
    %11 = sbr.rel (0) target = $region9
  $region8: #{branch_1_fun.1} parent=0 // pred_region
    _
  $region9: #{branch_1_fun.1} parent=0 // pred_fallthru
    _
  %s12 = sld [smem:[#allocation2]]
  %v13 = vld [vmem:[%s1] sm:$0xff]
  %v14 = vld [vmem:[%s1 + $0x8] sm:$0xff]
  %v17 = vlaneseq
  %v18 = vshrl.u32 %v17, 7
  %v19 = vsub.s32 1, %v18
  %v20 = vrot.slane %v13, %v19
  %v21 = vlaneseq
  %v22 = vshrl.u32 %v21, 7
  %v23 = vsub.s32 3, %v22
  %v24 = vrot.slane %v13, %v23
  %v25 = vlaneseq
  %v26 = vshrl.u32 %v25, 7
  %v27 = vsub.s32 5, %v26
  %v28 = vrot.slane %v13, %v27
  %v29 = vlaneseq
  %v30 = vshrl.u32 %v29, 7
  %v31 = vsub.s32 7, %v30
  %v32 = vrot.slane %v13, %v31
  %v33 = vlaneseq
  %v34 = vshrl.u32 %v33, 7
  %v35 = vsub.s32 1, %v34
  %v36 = vrot.slane %v14, %v35
  %v37 = vlaneseq
  %v38 = vshrl.u32 %v37, 7
  %v39 = vsub.s32 3, %v38
  %v40 = vrot.slane %v14, %v39
  %v41 = vlaneseq
  %v42 = vshrl.u32 %v41, 7
  %v43 = vsub.s32 5, %v42
  %v44 = vrot.slane %v14, %v43
  %v45 = vlaneseq
  %v46 = vshrl.u32 %v45, 7
  %v47 = vsub.s32 7, %v46
  %v48 = vrot.slane %v14, %v47
  %v57 = vlaneseq
  %v58 = vshrl.u32 %v57, 7
  %v59 = vsub.s32 0, %v58
  %v60 = vrot.slane %v13, %v59
  %v61 = vlaneseq
  %v62 = vshrl.u32 %v61, 7
  %v63 = vsub.s32 2, %v62
  %v64 = vrot.slane %v13, %v63
  %v65 = vlaneseq
  %v66 = vshrl.u32 %v65, 7
  %v67 = vsub.s32 4, %v66
  %v68 = vrot.slane %v13, %v67
  %v69 = vlaneseq
  %v70 = vshrl.u32 %v69, 7
  %v71 = vsub.s32 6, %v70
  %v72 = vrot.slane %v13, %v71
  %v73 = vlaneseq
  %v74 = vshrl.u32 %v73, 7
  %v75 = vsub.s32 0, %v74
  %v76 = vrot.slane %v14, %v75
  %v77 = vlaneseq
  %v78 = vshrl.u32 %v77, 7
  %v79 = vsub.s32 2, %v78
  %v80 = vrot.slane %v14, %v79
  %v81 = vlaneseq
  %v82 = vshrl.u32 %v81, 7
  %v83 = vsub.s32 4, %v82
  %v84 = vrot.slane %v14, %v83
  %v85 = vlaneseq
  %v86 = vshrl.u32 %v85, 7
  %v87 = vsub.s32 6, %v86
  %v88 = vrot.slane %v14, %v87
  %vm97 = vcmask 1040384
  %v98 = vsel %vm97, %v20, %v60
  %v99 = vsel %vm97, %v24, %v64
  %v100 = vsel %vm97, %v28, %v68
  %v101 = vsel %vm97, %v32, %v72
  %v102 = vsel %vm97, %v36, %v76
  %v103 = vsel %vm97, %v40, %v80
  %v104 = vsel %vm97, %v44, %v84
  %v105 = vsel %vm97, %v48, %v88
  %v106 = vstv %s12
  %v107 = vmul.f32 %v106, %v13
  %v108 = vmul.f32 %v106, %v14
  %s109 = ssub.f32 1.0, %s12
  %v110 = vstv %s109
  %v111 = vmul.f32 %v110, %v98
  %v112 = vmul.f32 %v110, %v99
  %v113 = vmul.f32 %v110, %v100
  %v114 = vmul.f32 %v110, %v101
  %v115 = vmul.f32 %v110, %v102
  %v116 = vmul.f32 %v110, %v103
  %v117 = vmul.f32 %v110, %v104
  %v118 = vmul.f32 %v110, %v105
  %v127 = vcombine.low %v111, %v112
  %v128 = vcombine.low %v113, %v114
  %v130 = vunpack.c.l.s4 1983009808
  %v131 = vunpack.c.0.s8 %v130
  %v132 = vlaneseq
  %v133 = vshrl.u32 %v132, 7
  %v134 = vsub.s32 %v131, %v133
  %v135 = vrot.slane %v127, %v134
  %v137 = vunpack.c.l.s4 1983009808
  %v138 = vunpack.c.0.s8 %v137
  %v139 = vlaneseq
  %v140 = vshrl.u32 %v139, 7
  %v141 = vsub.s32 %v138, %v140
  %v142 = vrot.slane %v128, %v141
  %v143 = vcombine.low %v135, %v142
  %v144 = vcombine.low %v115, %v116
  %v145 = vcombine.low %v117, %v118
  %v147 = vunpack.c.l.s4 1983009808
  %v148 = vunpack.c.0.s8 %v147
  %v149 = vlaneseq
  %v150 = vshrl.u32 %v149, 7
  %v151 = vsub.s32 %v148, %v150
  %v152 = vrot.slane %v144, %v151
  %v154 = vunpack.c.l.s4 1983009808
  %v155 = vunpack.c.0.s8 %v154
  %v156 = vlaneseq
  %v157 = vshrl.u32 %v156, 7
  %v158 = vsub.s32 %v155, %v157
  %v159 = vrot.slane %v145, %v158
  %v160 = vcombine.low %v152, %v159
  %v163 = vadd.f32 %v107, %v143
  %v164 = vadd.f32 %v108, %v160
  %165 = vst [vmem:[%s2] sm:$0xff] %v163
  %166 = vst [vmem:[%s2 + $0x8] sm:$0xff] %v164
  // Predicated region
  $region10: #{branch_1_fun.1} parent=0 // pred_check
    _
  $region11: #{branch_1_fun.1} parent=0 // pred_check_branch
    %168 = sbr.rel (0) target = $region13
  $region12: #{branch_1_fun.1} parent=0 // pred_region
    _
  $region13: #{branch_1_fun.1} parent=0 // pred_fallthru
    _
  // Predicated region
  $region14: #{branch_1_fun.1} parent=0 // pred_check
    _
  $region15: #{branch_1_fun.1} parent=0 // pred_check_branch
    %170 = sbr.rel (0) target = $region17
  $region16: #{branch_1_fun.1} parent=0 // pred_region
    _
  $region17: #{branch_1_fun.1} parent=0 // pred_fallthru
    _

</llo_original>
